<compile_context>
chip_gen: v6e
topology: v6e:2x2x1
jax: 0.10.0
libtpu: 0.0.40
codegen_flags: <defaults>
</compile_context>

<pallas_src>
import functools
import math

import jax
import jax.numpy as jnp
from jax import lax
from jax.experimental import pallas as pl
from jax.experimental.pallas import tpu as pltpu

LANES = 128
SUBLANES = 8


def _tpu_profile():
    """Return (tensorcores_per_chip, per-input per-step tile byte target)."""
    kind = ""
    try:
        kind = jax.devices()[0].device_kind.lower()
    except Exception:
        pass
    is_v5e = ("v5 lite" in kind) or ("v5e" in kind) or ("v5lite" in kind)
    is_v7 = "v7" in kind
    cores = 2 if is_v7 else 1          # v5e/v6e: 1 TC/chip; v7x: 2 TC/chip
    # v5e (0.82 TB/s, 16 MiB default scoped VMEM): 1 MiB/input/step is enough
    # to amortize step overhead; v6e/v7x: 2 MiB/input/step (~90%+ of roofline).
    tile_bytes = (1 << 20) if is_v5e else (2 << 20)
    return cores, tile_bytes


def _lsgan_partial_sums_kernel(fake_ref, real_ref, acc_ref, *,
                               valid_rows, tile_rows, steps, needs_mask):
    """Accumulate per-(sublane,lane) partial sums of (real-1)^2 + fake^2.

    fake_ref / real_ref : (tile_rows, 128) tiles, native input dtype
    acc_ref             : (1, 8, 128) f32 resident accumulator block (per split)
    """
    c = pl.program_id(0)            # split / core index   (core-parallel on v7x)
    i = pl.program_id(1)            # reduction step       ("arbitrary")

    @pl.when(i == 0)
    def _():
        acc_ref[...] = jnp.zeros_like(acc_ref)

    groups = tile_rows // SUBLANES

    def accumulate(masked):
        r = real_ref[...].astype(jnp.float32)   # cast in-kernel (inputs may be bf16)
        f = fake_ref[...].astype(jnp.float32)
        d = r - 1.0
        t = d * d + f * f           # fused: loss only ever needs sum_real + sum_fake
        if masked:
            # Logical (unclamped) tile start row; OOB / ghost rows -> zero.
            row0 = (c * steps + i) * tile_rows
            rows_left = valid_rows - row0
            mask = lax.broadcasted_iota(jnp.int32, (tile_rows, LANES), 0) < rows_left
            t = jnp.where(mask, t, 0.0)
        # Fold (tile_rows, 128) -> (1, 8, 128): each (8,128) group is one vreg,
        # so this is pure elementwise VPU accumulation into the resident block.
        acc_ref[...] += jnp.sum(t.reshape(groups, SUBLANES, LANES),
                                axis=0, keepdims=True)

    if needs_mask:
        # Keep masking off the steady-state path: only the partial last tile and
        # ghost tiles take the masked branch; full tiles stay unmasked.
        row0 = (c * steps + i) * tile_rows
        is_partial = row0 + tile_rows > valid_rows

        @pl.when(jnp.logical_not(is_partial))
        def _():
            accumulate(masked=False)

        @pl.when(is_partial)
        def _():
            accumulate(masked=True)
    else:
        accumulate(masked=False)


def ad_loss_lsgan(pred_fake, pred_real):
    """AD_LOSS.forward(pred_fake, pred_real) with gan_mode='lsgan' (the default)."""
    # TODO(synk): only the default 'lsgan' mode is lowered; GANLoss 'vanilla'
    # (BCEWithLogitsLoss) and 'wgangp' modes are not implemented here.
    assert pred_fake.shape == pred_real.shape, "fake/real predictions must match"
    assert pred_fake.dtype == pred_real.dtype

    n = math.prod(pred_fake.shape)
    flat_f = jnp.reshape(pred_fake, (-1,))
    flat_r = jnp.reshape(pred_real, (-1,))

    # Row granularity for the native dtype's sublane packing (f32:8, bf16:16, int8:32).
    itemsize = int(jnp.dtype(pred_fake.dtype).itemsize)
    gran = SUBLANES * max(1, 4 // itemsize)

    cores, tile_bytes = _tpu_profile()
    # Dtype-scaled max tile: same bytes/step regardless of dtype.
    max_tile_rows = max(gran, (tile_bytes // (LANES * itemsize)) // gran * gran)

    rows = n // LANES                 # number of full lane-dense rows
    total = jnp.float32(0.0)
    n_covered = 0

    if rows >= gran:
        tile_rows = min(max_tile_rows, (rows // gran) * gran)
        n_tiles = pl.cdiv(rows, tile_rows)
        splits = min(cores, n_tiles)          # 1 on v5e/v6e -> no ghost tiles
        steps = pl.cdiv(n_tiles, splits)
        # Masking only needed if a partial last tile or ghost tiles exist.
        needs_mask = (rows % tile_rows != 0) or (n_tiles % splits != 0)

        n_covered = rows * LANES
        if n_covered == n:
            main_f = flat_f.reshape(rows, LANES)
            main_r = flat_r.reshape(rows, LANES)
        else:
            main_f = flat_f[:n_covered].reshape(rows, LANES)
            main_r = flat_r[:n_covered].reshape(rows, LANES)

        def in_map(c, i):
            # Clamp ghost tiles onto the last real tile; they are fully masked.
            return (jnp.minimum(c * steps + i, n_tiles - 1), 0)

        kernel = functools.partial(
            _lsgan_partial_sums_kernel,
            valid_rows=rows, tile_rows=tile_rows, steps=steps,
            needs_mask=needs_mask)

        if splits > 1:
            # Genuinely shard the split axis across TensorCores (v7x).
            dim_sem = (pltpu.CORE_PARALLEL, pltpu.ARBITRARY)
        else:
            dim_sem = ("arbitrary", "arbitrary")

        sums = pl.pallas_call(
            kernel,
            out_shape=jax.ShapeDtypeStruct((splits, SUBLANES, LANES), jnp.float32),
            grid_spec=pltpu.PrefetchScalarGridSpec(
                num_scalar_prefetch=0,
                grid=(splits, steps),
                in_specs=[
                    pl.BlockSpec((tile_rows, LANES), in_map),
                    pl.BlockSpec((tile_rows, LANES), in_map),
                ],
                out_specs=pl.BlockSpec((1, SUBLANES, LANES), lambda c, i: (c, 0, 0)),
            ),
            compiler_params=pltpu.CompilerParams(dimension_semantics=dim_sem),
        )(main_f, main_r)

        total = jnp.sum(sums, dtype=jnp.float32)

    if n_covered < n:
        # Sub-128-element remainder (or tiny inputs): exact plain-jnp reduction.
        tr = flat_r[n_covered:].astype(jnp.float32)
        tf = flat_f[n_covered:].astype(jnp.float32)
        total = total + jnp.sum((tr - 1.0) ** 2) + jnp.sum(tf * tf)

    # 0.5 * (mean((real-1)^2) + mean(fake^2)) == 0.5 * (sum_real + sum_fake) / n
    return 0.5 * total / jnp.float32(n)


def _reference(pred_fake, pred_real):
    pf = pred_fake.astype(jnp.float32)
    pr = pred_real.astype(jnp.float32)
    return 0.5 * (jnp.mean((pr - 1.0) ** 2) + jnp.mean(pf ** 2))


if __name__ == "__main__":
    key = jax.random.PRNGKey(0)
    k1, k2, k3, k4 = jax.random.split(key, 4)

    # Discriminator logits, NCHW.
    pred_fake = jax.random.normal(k1, (2, 4, 16, 16), dtype=jnp.float32)
    pred_real = jax.random.normal(k2, (2, 4, 16, 16), dtype=jnp.float32) + 0.5
    loss = jax.block_until_ready(ad_loss_lsgan(pred_fake, pred_real))
    ref = jax.block_until_ready(_reference(pred_fake, pred_real))
    assert jnp.allclose(loss, ref, rtol=1e-5, atol=1e-5), (loss, ref)

    # Odd-sized input: exercises the partial-last-tile mask path and the <128 tail.
    pf2 = jax.random.normal(k3, (2, 4, 30, 35), dtype=jnp.float32)
    pr2 = jax.random.normal(k4, (2, 4, 30, 35), dtype=jnp.float32) + 0.5
    loss2 = jax.block_until_ready(ad_loss_lsgan(pf2, pr2))
    ref2 = jax.block_until_ready(_reference(pf2, pr2))
    assert jnp.allclose(loss2, ref2, rtol=1e-5, atol=1e-5), (loss2, ref2)

    print("KERNEL_OK")
</pallas_src>

<mosaic_0001>
module attributes {stable_mosaic.version = 11 : i64} {
  func.func @_lsgan_partial_sums_kernel(%arg0: i32, %arg1: i32, %arg2: memref<16x128xf32, #tpu.memory_space<vmem>>, %arg3: memref<16x128xf32, #tpu.memory_space<vmem>>, %arg4: memref<1x8x128xf32, #tpu.memory_space<vmem>>) attributes {dimension_semantics = [#tpu.dimension_semantics<arbitrary>, #tpu.dimension_semantics<arbitrary>], iteration_bounds = array<i64: 1, 1>, scalar_prefetch = 0 : i64, scratch_operands = 0 : i64, tpu.core_type = #tpu.core_type<tc>, window_params = [{transform_indices = @transform_0, window_bounds = array<i64: 16, 128>}, {transform_indices = @transform_1, window_bounds = array<i64: 16, 128>}, {transform_indices = @transform_2, window_bounds = array<i64: 1, 8, 128>}]} {
    %c0_i32 = arith.constant 0 : i32
    %0 = arith.cmpi eq, %arg1, %c0_i32 : i32
    %1 = arith.extui %0 : i1 to i32
    %c0_i32_0 = arith.constant 0 : i32
    %2 = arith.cmpi ne, %1, %c0_i32_0 : i32
    scf.if %2 {
      %cst_11 = arith.constant 0.000000e+00 : f32
      %16 = vector.broadcast %cst_11 : f32 to vector<1x8x128xf32>
      %c0_12 = arith.constant 0 : index
      %c0_13 = arith.constant 0 : index
      %c0_14 = arith.constant 0 : index
      %17 = vector.load %arg4[%c0_12, %c0_13, %c0_14] : memref<1x8x128xf32, #tpu.memory_space<vmem>>, vector<1x8x128xf32>
      tpu.vector_store %arg4[%c0_12, %c0_13, %c0_14], %16 {strides = array<i32>} : memref<1x8x128xf32, #tpu.memory_space<vmem>>, vector<1x8x128xf32>,
    } else {
    }
    %c0 = arith.constant 0 : index
    %c0_1 = arith.constant 0 : index
    %3 = vector.load %arg3[%c0, %c0_1] : memref<16x128xf32, #tpu.memory_space<vmem>>, vector<16x128xf32>
    %c0_2 = arith.constant 0 : index
    %c0_3 = arith.constant 0 : index
    %4 = vector.load %arg2[%c0_2, %c0_3] : memref<16x128xf32, #tpu.memory_space<vmem>>, vector<16x128xf32>
    %cst = arith.constant 1.000000e+00 : f32
    %5 = vector.broadcast %cst : f32 to vector<16x128xf32>
    %6 = arith.subf %3, %5 : vector<16x128xf32>
    %7 = arith.mulf %6, %6 : vector<16x128xf32>
    %8 = arith.mulf %4, %4 : vector<16x128xf32>
    %9 = arith.addf %7, %8 : vector<16x128xf32>
    %c0_4 = arith.constant 0 : index
    %c0_5 = arith.constant 0 : index
    %c0_6 = arith.constant 0 : index
    %10 = vector.load %arg4[%c0_4, %c0_5, %c0_6] : memref<1x8x128xf32, #tpu.memory_space<vmem>>, vector<1x8x128xf32>
    %11 = vector.shape_cast %9 : vector<16x128xf32> to vector<2x8x128xf32>
    %cst_7 = arith.constant dense<0.000000e+00> : vector<8x128xf32>
    %12 = vector.multi_reduction <add>, %11, %cst_7 [0] : vector<2x8x128xf32> to vector<8x128xf32>
    %13 = vector.shape_cast %12 : vector<8x128xf32> to vector<1x8x128xf32>
    %14 = arith.addf %10, %13 : vector<1x8x128xf32>
    %c0_8 = arith.constant 0 : index
    %c0_9 = arith.constant 0 : index
    %c0_10 = arith.constant 0 : index
    %15 = vector.load %arg4[%c0_8, %c0_9, %c0_10] : memref<1x8x128xf32, #tpu.memory_space<vmem>>, vector<1x8x128xf32>
    tpu.vector_store %arg4[%c0_8, %c0_9, %c0_10], %14 {strides = array<i32>} : memref<1x8x128xf32, #tpu.memory_space<vmem>>, vector<1x8x128xf32>,
    return
  }
  func.func @transform_0(%arg0: i32, %arg1: i32) -> (i32, i32) {
    %c1_i32 = arith.constant 1 : i32
    %0 = arith.muli %arg0, %c1_i32 : i32
    %1 = arith.addi %0, %arg1 : i32
    %c0_i32 = arith.constant 0 : i32
    %2 = arith.minsi %1, %c0_i32 : i32
    %c0_i32_0 = arith.constant 0 : i32
    %c0_i32_1 = arith.constant 0 : i32
    return %2, %c0_i32_0 : i32, i32
  }
  func.func @transform_1(%arg0: i32, %arg1: i32) -> (i32, i32) {
    %c1_i32 = arith.constant 1 : i32
    %0 = arith.muli %arg0, %c1_i32 : i32
    %1 = arith.addi %0, %arg1 : i32
    %c0_i32 = arith.constant 0 : i32
    %2 = arith.minsi %1, %c0_i32 : i32
    %c0_i32_0 = arith.constant 0 : i32
    %c0_i32_1 = arith.constant 0 : i32
    return %2, %c0_i32_0 : i32, i32
  }
  func.func @transform_2(%arg0: i32, %arg1: i32) -> (i32, i32, i32) {
    %c0_i32 = arith.constant 0 : i32
    %c0_i32_0 = arith.constant 0 : i32
    %c0_i32_1 = arith.constant 0 : i32
    return %arg0, %c0_i32, %c0_i32_0 : i32, i32, i32
  }
}

</mosaic_0001>

<llo_original>
// kernel: tpu_custom_call.1
$region0: #{tpu_custom_call.1}
  #allocation0 [shape = 'u32[]', space=smem, size = 0x4, offset = 0x4, fixed_abs, tag = 'smem constant byte address 0x4 - core index']
  #allocation1 [shape = 'u32[144,128]{1,0:T(1,128)}', space=vmem, size = 0x12000, scoped, tag = 'internal scratch']
  %s0 = inlined_call_operand.hbm [shape: f32[16,128], index: 0, kind: input, shape index: {}]
  %s1 = inlined_call_operand.hbm [shape: f32[16,128], index: 1, kind: input, shape index: {}]
  %s2 = inlined_call_operand.hbm [shape: f32[1,8,128], index: 2, kind: output, shape index: {}]
  %s3 = sld [smem:[#allocation0]]
  $region30: #{tpu_custom_call.1} parent=0
    _
  %s5 = ssub.s32 1, %s3
  %s6 = scalar_select 0, %s5, %s3
  $region1: #{tpu_custom_call.1} parent=0
    #allocation2 [shape = 'u8[8192]{0}', space=vmem, size = 0x2000, scoped, tag = 'input window, operand 0, single buffered']
    #allocation3 [shape = 's32[1]{0}', space=sflag, size = 0x4, scoped, tag = 'scoped memory for tpu_custom_call.1']
    #allocation4 [shape = 's32[1]{0}', space=sflag, size = 0x4, scoped, tag = 'scoped memory for tpu_custom_call.1']
    #allocation5 [shape = 'u8[8192]{0}', space=vmem, size = 0x2000, scoped, tag = 'input window, operand 1, single buffered']
    #allocation6 [shape = 's32[1]{0}', space=sflag, size = 0x4, scoped, tag = 'scoped memory for tpu_custom_call.1']
    #allocation7 [shape = 'u8[4096]{0}', space=vmem, size = 0x1000, scoped, tag = 'output window, operand 0, single buffered']
    %7 = vsyncpa [#allocation3], 0
    %8 = vsyncpa [#allocation6], 0
    %9 = vsyncpa [#allocation4], 0
    // Predicated region
    $region2: #{tpu_custom_call.1} parent=1 // pred_check
      _
    $region3: #{tpu_custom_call.1} parent=1 // pred_check_branch
      %11 = sbr.rel (0) target = $region5
    $region4: #{tpu_custom_call.1} parent=1 // pred_region
      %s12 = sadd.s32 0, 0
      %p13 = scmp.lt.s32.totalorder %s12, 0
      %s14 = scalar_select %p13, %s12, 0
      %s15 = smul.u32 2, %s14
      %s17 = ssub.s32 256, 256
      %18 = vsyncadd [#allocation3], %s17
      %s19 = smul.addr %s15, 128
      %s20 = scalar_lea.hbm %s0, %s19
      %s21 = sshll.u32 [#allocation2], 4
      %s22 = int_to_ptr.vmem [resolvable:$true] %s21
      %27 = dma.hbm_to_vmem [thread:$0]  %s20, 256, %s22, [#allocation3], 128, 128, 8
    $region5: #{tpu_custom_call.1} parent=1 // pred_fallthru
      _
    // Predicated region
    $region6: #{tpu_custom_call.1} parent=1 // pred_check
      _
    $region7: #{tpu_custom_call.1} parent=1 // pred_check_branch
      %29 = sbr.rel (0) target = $region9
    $region8: #{tpu_custom_call.1} parent=1 // pred_region
      %s30 = sadd.s32 0, 0
      %p31 = scmp.lt.s32.totalorder %s30, 0
      %s32 = scalar_select %p31, %s30, 0
      %s33 = smul.u32 2, %s32
      %s35 = ssub.s32 256, 256
      %36 = vsyncadd [#allocation6], %s35
      %s37 = smul.addr %s33, 128
      %s38 = scalar_lea.hbm %s1, %s37
      %s39 = sshll.u32 [#allocation5], 4
      %s40 = int_to_ptr.vmem [resolvable:$true] %s39
      %45 = dma.hbm_to_vmem [thread:$0]  %s38, 256, %s40, [#allocation6], 128, 128, 8
    $region9: #{tpu_custom_call.1} parent=1 // pred_fallthru
      _
    // Predicated region
    $region10: #{tpu_custom_call.1} parent=1 // pred_check
      _
    $region11: #{tpu_custom_call.1} parent=1 // pred_check_branch
      %47 = sbr.rel (0) target = $region13
    $region12: #{tpu_custom_call.1} parent=1 // pred_region
      %48 = dma.done [#allocation3], 256
    $region13: #{tpu_custom_call.1} parent=1 // pred_fallthru
      _
    // Predicated region
    $region14: #{tpu_custom_call.1} parent=1 // pred_check
      _
    $region15: #{tpu_custom_call.1} parent=1 // pred_check_branch
      %50 = sbr.rel (0) target = $region17
    $region16: #{tpu_custom_call.1} parent=1 // pred_region
      %51 = dma.done [#allocation6], 256
    $region17: #{tpu_custom_call.1} parent=1 // pred_fallthru
      _
    %s52 = sadd.s32 0, 0
    %p53 = scmp.lt.s32.totalorder %s52, 0
    %s54 = scalar_select %p53, %s52, 0
    %s55 = smul.u32 2, %s54
    %s56 = sadd.s32 0, 0
    %p57 = scmp.lt.s32.totalorder %s56, 0
    %s58 = scalar_select %p57, %s56, 0
    %s59 = smul.u32 2, %s58
    %p60 = scmp.eq.s32.totalorder 0, 0
    // Predicated region
    $region18: #{tpu_custom_call.1} parent=1 // pred_check
      %p61 = pneg %p60
    $region19: #{tpu_custom_call.1} parent=1 // pred_check_branch
      %63 = sbr.rel (%p61) target = $region21
    $region20: #{tpu_custom_call.1} parent=1 // pred_region
      %64 = vst [vmem:[#allocation7] sm:$0xff] 0.0
    $region21: #{tpu_custom_call.1} parent=1 // pred_fallthru
      _
    %v65 = vld [vmem:[#allocation5] sm:$0xff]
    %v66 = vld [vmem:[#allocation5 + $0x8] sm:$0xff]
    %v67 = vld [vmem:[#allocation2] sm:$0xff]
    %v68 = vld [vmem:[#allocation2 + $0x8] sm:$0xff]
    %v69 = vsub.f32 %v65, 1.0
    %v70 = vsub.f32 %v66, 1.0
    %v71 = vmul.f32 %v69, %v69
    %v72 = vmul.f32 %v70, %v70
    %v73 = vmul.f32 %v67, %v67
    %v74 = vmul.f32 %v68, %v68
    %v75 = vadd.f32 %v71, %v73
    %v76 = vadd.f32 %v72, %v74
    %v77 = vld [vmem:[#allocation7] sm:$0xff]
    %v78 = vadd.f32 %v75, %v76
    %v79 = vadd.f32 %v77, %v78
    %80 = vst [vmem:[#allocation7] sm:$0xff] %v79
    // Predicated region
    $region22: #{tpu_custom_call.1} parent=1 // pred_check
      _
    $region23: #{tpu_custom_call.1} parent=1 // pred_check_branch
      %82 = sbr.rel (0) target = $region25
    $region24: #{tpu_custom_call.1} parent=1 // pred_region
      %s84 = ssub.s32 128, 128
      %85 = vsyncadd [#allocation4], %s84
      %s87 = sshll.u32 [#allocation7], 4
      %s88 = int_to_ptr.vmem [resolvable:$true] %s87
      %90 = dma.vmem_to_hbm [thread:$0]  %s88, 128, %s2, [#allocation4]
    $region25: #{tpu_custom_call.1} parent=1 // pred_fallthru
      _
    // Predicated region
    $region26: #{tpu_custom_call.1} parent=1 // pred_check
      _
    $region27: #{tpu_custom_call.1} parent=1 // pred_check_branch
      %92 = sbr.rel (0) target = $region29
    $region28: #{tpu_custom_call.1} parent=1 // pred_region
      %93 = dma.done [#allocation4], 128
    $region29: #{tpu_custom_call.1} parent=1 // pred_fallthru
      _
    %94 = vsyncpa [#allocation3], 1
    %95 = vsyncpa [#allocation6], 1
    %96 = vsyncpa [#allocation4], 1

</llo_original>
